<compile_context>
chip_gen: v7x
topology: tpu7x:2x2x1
jax: 0.10.0
libtpu: 0.0.40
codegen_flags: <defaults>
</compile_context>

<pallas_src>
import functools

import jax
import jax.numpy as jnp
from jax.experimental import pallas as pl
from jax.experimental.pallas import tpu as pltpu


def _round_up(x, m):
    return (x + m - 1) // m * m


def _default_activation_dtype():
    """bf16 activations on chips with a bf16 VPU/EUP (v6e/v7x); f32 elsewhere."""
    try:
        kind = jax.devices()[0].device_kind.lower()
        if ("v6" in kind) or ("v7" in kind) or ("trillium" in kind):
            return jnp.bfloat16
    except Exception:
        pass
    return jnp.float32


def _gated_logits(x_ref, wvu_ref, bvu_ref, ww_ref, bw_ref, *, D, K, act_dtype):
    """Unnormalized attention logits (incl. bw) for one tile of instances.

    x_ref   : [TN, L]   f32 (or bf16)  -- cast to bf16 in-kernel
    wvu_ref : [L, 2D]   bf16           (Wv || Wu fused)
    bvu_ref : [1, 2D]   f32            (bv || bu fused)
    ww_ref  : [1, D] f32 (K==1, VPU path)  or  [D, K] bf16 (MXU path)
    bw_ref  : [1, K]    f32
    returns : [TN, K]   f32
    """
    # In-kernel f32 -> bf16 cast: the kernel reads x straight from HBM in its
    # original dtype (no separate XLA convert pass doubling HBM traffic).
    x = x_ref[...].astype(jnp.bfloat16)                                # [TN, L]

    # One fused MXU matmul for both gating branches, f32 accumulation.
    # NOTE: the h[:, :D] / h[:, D:] split is lane-aligned only when D % 128
    # == 0 (true for the module default D=128); other D still lowers
    # correctly but pays a relayout.
    h = jnp.dot(x, wvu_ref[...], preferred_element_type=jnp.float32)   # [TN, 2D]
    h = h + bvu_ref[...]

    a_v = jnp.tanh(h[:, :D].astype(act_dtype))                         # [TN, D]
    a_u = jax.nn.sigmoid(h[:, D:].astype(act_dtype))                   # [TN, D]
    gated = a_v * a_u                                                  # [TN, D]

    if K == 1:
        # VPU multiply + lane reduction: avoids a 1-lane-wide MXU matmul.
        logits = jnp.sum(gated.astype(jnp.float32) * ww_ref[...],
                         axis=-1, keepdims=True)                       # [TN, 1]
    else:
        logits = jnp.dot(gated.astype(jnp.bfloat16), ww_ref[...],
                         preferred_element_type=jnp.float32)           # [TN, K]
    return logits + bw_ref[...]


def _logits_kernel(x_ref, wvu_ref, bvu_ref, ww_ref, bw_ref, out_ref,
                   *, D, K, act_dtype):
    out_ref[...] = _gated_logits(x_ref, wvu_ref, bvu_ref, ww_ref, bw_ref,
                                 D=D, K=K, act_dtype=act_dtype)


def _fused_small_kernel(x_ref, wvu_ref, bvu_ref, ww_ref, bw_ref, out_ref,
                        *, D, K, act_dtype, apply_softmax):
    """Single-block fast path: logits + (optional) softmax over N in-kernel.

    No padding rows exist here (whole-array block), so no -inf masking is
    required before the softmax.
    """
    logits = _gated_logits(x_ref, wvu_ref, bvu_ref, ww_ref, bw_ref,
                           D=D, K=K, act_dtype=act_dtype)              # [N, K]
    if apply_softmax:
        m = jnp.max(logits, axis=0, keepdims=True)                     # [1, K]
        e = jnp.exp(logits - m)
        out_ref[...] = e / jnp.sum(e, axis=0, keepdims=True)
    else:
        out_ref[...] = logits


def prepare_attention_params(wv, bv, wu, bu, ww, bw):
    """One-time weight fusion / dtype prep (hoisted out of the forward path)."""
    L, D = wv.shape
    K = ww.shape[1]
    w_vu = jnp.concatenate([wv, wu], axis=1).astype(jnp.bfloat16)       # [L, 2D]
    b_vu = jnp.concatenate([bv.reshape(1, D), bu.reshape(1, D)],
                           axis=1).astype(jnp.float32)                  # [1, 2D]
    if K == 1:
        ww_arg = ww.reshape(1, D).astype(jnp.float32)                   # VPU path
    else:
        ww_arg = ww.astype(jnp.bfloat16)                                # MXU path
    bw_arg = bw.reshape(1, K).astype(jnp.float32)
    return w_vu, b_vu, ww_arg, bw_arg


def _attention_forward_impl(x, w_vu, b_vu, ww, bw, *, is_norm=True,
                            activation_dtype=None, tile_n=1024,
                            small_n_threshold=512):
    """Forward pass of the `Attention` module. Returns [K, N]."""
    N, L = x.shape
    D = w_vu.shape[1] // 2
    K = bw.shape[-1]
    act_dtype = (_default_activation_dtype()
                 if activation_dtype is None else activation_dtype)

    # Explicit VMEM budget: v5e's default scoped VMEM is only 16 MiB; our
    # peak (2x ~2-4 MiB x tiles + ~0.3 MiB resident weights) is well below.
    vmem_limit = 32 * 1024 * 1024

    # ---- single-block fast path for small bags (module default N=8) ----
    if N <= small_n_threshold:
        kernel = functools.partial(_fused_small_kernel, D=D, K=K,
                                   act_dtype=act_dtype, apply_softmax=is_norm)
        out = pl.pallas_call(
            kernel,
            out_shape=jax.ShapeDtypeStruct((N, K), jnp.float32),
            compiler_params=pltpu.CompilerParams(vmem_limit_bytes=vmem_limit),
        )(x, w_vu, b_vu, ww, bw)
        # For K == 1 this transpose is a degenerate (free) reshape in XLA.
        return out.T                                                     # [K, N]

    # ---- tiled path over the instance axis N ----
    # Balanced tiles (minimize boundary waste), at least two tiles so the
    # "parallel" grid axis can be sharded across v7x's 2 TensorCores.
    num_tiles = max(pl.cdiv(N, tile_n), 2)
    tn = _round_up(pl.cdiv(N, num_tiles), 16)
    grid = (pl.cdiv(N, tn),)

    if K == 1:
        ww_spec = pl.BlockSpec((1, D), lambda i: (0, 0))
    else:
        ww_spec = pl.BlockSpec((D, K), lambda i: (0, 0))

    kernel = functools.partial(_logits_kernel, D=D, K=K, act_dtype=act_dtype)

    # No explicit padding: the partial last tile is handled by Pallas'
    # boundary masking (input pad rows are garbage but stay row-local and
    # their output rows are never written since out_shape is exactly [N, K]).
    logits = pl.pallas_call(
        kernel,
        out_shape=jax.ShapeDtypeStruct((N, K), jnp.float32),
        grid=grid,
        in_specs=[
            pl.BlockSpec((tn, L), lambda i: (i, 0)),       # x tile, pipelined over N
            pl.BlockSpec((L, 2 * D), lambda i: (0, 0)),    # fused Wv|Wu, resident
            pl.BlockSpec((1, 2 * D), lambda i: (0, 0)),    # fused bv|bu, resident
            ww_spec,                                        # final projection, resident
            pl.BlockSpec((1, K), lambda i: (0, 0)),         # bw, resident
        ],
        out_specs=pl.BlockSpec((tn, K), lambda i: (i, 0)),
        compiler_params=pltpu.CompilerParams(
            dimension_semantics=("parallel",),
            vmem_limit_bytes=vmem_limit,
        ),
    )(x, w_vu, b_vu, ww, bw)

    a = logits.T                                                         # [K, N]
    if is_norm:
        a = jax.nn.softmax(a, axis=1)
    return a


attention_forward = jax.jit(
    _attention_forward_impl,
    static_argnames=("is_norm", "activation_dtype", "tile_n", "small_n_threshold"),
)


def reference_forward(x, wv, bv, wu, bu, ww, bw, *, is_norm=True,
                      activation_dtype=jnp.float32):
    """Pure-jnp reference mirroring the kernel's numerics (bf16 MXU inputs)."""
    L, D = wv.shape
    K = ww.shape[1]
    xb = x.astype(jnp.bfloat16)
    w_vu = jnp.concatenate([wv, wu], axis=1).astype(jnp.bfloat16)
    b_vu = jnp.concatenate([bv.reshape(1, D), bu.reshape(1, D)], axis=1)
    h = jnp.dot(xb, w_vu, preferred_element_type=jnp.float32) + b_vu
    a_v = jnp.tanh(h[:, :D].astype(activation_dtype))
    a_u = jax.nn.sigmoid(h[:, D:].astype(activation_dtype))
    gated = a_v * a_u
    if K == 1:
        logits = jnp.sum(gated.astype(jnp.float32) * ww.reshape(1, D),
                         axis=-1, keepdims=True)
    else:
        logits = jnp.dot(gated.astype(jnp.bfloat16), ww.astype(jnp.bfloat16),
                         preferred_element_type=jnp.float32)
    a = (logits + bw.reshape(1, K)).T
    if is_norm:
        a = jax.nn.softmax(a, axis=1)
    return a


def xavier_normal(key, fan_in, fan_out):
    # nn.init.xavier_normal_ on a torch Linear weight [out, in], stored here
    # as [in, out] (distributionally equivalent).
    std = (2.0 / (fan_in + fan_out)) ** 0.5
    return std * jax.random.normal(key, (fan_in, fan_out), dtype=jnp.float32)


if __name__ == "__main__":
    # Module-default dims: L=512, D=128.
    L, D = 512, 128
    keys = jax.random.split(jax.random.PRNGKey(0), 12)

    wv = xavier_normal(keys[0], L, D)
    wu = xavier_normal(keys[1], L, D)
    # Nonzero biases (torch init zeroes them) so bias handling is exercised.
    bv = 0.10 * jax.random.normal(keys[2], (1, D), dtype=jnp.float32)
    bu = 0.05 * jax.random.normal(keys[3], (1, D), dtype=jnp.float32)

    # ---------------- K = 1 (module default) ----------------
    ww1 = xavier_normal(keys[4], D, 1)
    bw1 = 0.2 * jax.random.normal(keys[5], (1, 1), dtype=jnp.float32)
    params1 = prepare_attention_params(wv, bv, wu, bu, ww1, bw1)

    # Small bag: single-block fast path (softmax fused in-kernel).
    N1 = 8
    x1 = jax.random.normal(keys[6], (N1, L), dtype=jnp.float32)

    out = jax.block_until_ready(
        attention_forward(x1, *params1, activation_dtype=jnp.float32))
    assert out.shape == (1, N1)
    assert jnp.allclose(jnp.sum(out, axis=1), 1.0, atol=1e-5)
    ref = reference_forward(x1, wv, bv, wu, bu, ww1, bw1,
                            activation_dtype=jnp.float32)
    assert jnp.allclose(out, ref, atol=1e-3, rtol=1e-3)

    # Non-normalized path (validates the in-kernel bw addition).
    out_raw = jax.block_until_ready(
        attention_forward(x1, *params1, is_norm=False,
                          activation_dtype=jnp.float32))
    ref_raw = reference_forward(x1, wv, bv, wu, bu, ww1, bw1, is_norm=False,
                                activation_dtype=jnp.float32)
    assert jnp.allclose(out_raw, ref_raw, atol=1e-3, rtol=1e-3)

    # Default (auto-detected) activation dtype: bf16 on v6e/v7x, f32 on v5e.
    auto_dt = _default_activation_dtype()
    out_auto = jax.block_until_ready(attention_forward(x1, *params1))
    ref_auto = reference_forward(x1, wv, bv, wu, bu, ww1, bw1,
                                 activation_dtype=auto_dt)
    assert out_auto.shape == (1, N1)
    assert jnp.allclose(jnp.sum(out_auto, axis=1), 1.0, atol=1e-4)
    assert jnp.max(jnp.abs(out_auto - ref_auto)) < 5e-2

    # Larger bag: tiled path (balanced tiles, >=2 grid steps, partial tile).
    N2 = 1000
    x2 = jax.random.normal(keys[7], (N2, L), dtype=jnp.float32)
    out2 = jax.block_until_ready(
        attention_forward(x2, *params1, activation_dtype=jnp.float32))
    assert out2.shape == (1, N2)
    assert jnp.allclose(jnp.sum(out2, axis=1), 1.0, atol=1e-4)
    ref2 = reference_forward(x2, wv, bv, wu, bu, ww1, bw1,
                             activation_dtype=jnp.float32)
    assert jnp.allclose(out2, ref2, atol=1e-3, rtol=1e-3)

    # ---------------- K = 3 (MXU final-projection path) ----------------
    K3 = 3
    ww3 = xavier_normal(keys[8], D, K3)
    bw3 = 0.2 * jax.random.normal(keys[9], (1, K3), dtype=jnp.float32)
    params3 = prepare_attention_params(wv, bv, wu, bu, ww3, bw3)

    N3 = 600
    x3 = jax.random.normal(keys[10], (N3, L), dtype=jnp.float32)
    out3 = jax.block_until_ready(
        attention_forward(x3, *params3, activation_dtype=jnp.float32))
    assert out3.shape == (K3, N3)
    assert jnp.allclose(jnp.sum(out3, axis=1), jnp.ones((K3,)), atol=1e-4)
    ref3 = reference_forward(x3, wv, bv, wu, bu, ww3, bw3,
                             activation_dtype=jnp.float32)
    assert jnp.allclose(out3, ref3, atol=1e-3, rtol=1e-3)

    print("KERNEL_OK")
</pallas_src>

<mosaic_0001>
module attributes {stable_mosaic.version = 11 : i64} {
  func.func @_fused_small_kernel(%arg0: memref<8x512xf32, #tpu.memory_space<vmem>>, %arg1: memref<512x256xbf16, #tpu.memory_space<vmem>>, %arg2: memref<1x256xf32, #tpu.memory_space<vmem>>, %arg3: memref<1x128xf32, #tpu.memory_space<vmem>>, %arg4: memref<1x1xf32, #tpu.memory_space<vmem>>, %arg5: memref<8x1xf32, #tpu.memory_space<vmem>>) attributes {dimension_semantics = [], scalar_prefetch = 0 : i64, scratch_operands = 0 : i64, tpu.core_type = #tpu.core_type<tc>} {
    %c0 = arith.constant 0 : index
    %c0_0 = arith.constant 0 : index
    %0 = vector.load %arg0[%c0, %c0_0] : memref<8x512xf32, #tpu.memory_space<vmem>>, vector<8x512xf32>
    %1 = arith.truncf %0 : vector<8x512xf32> to vector<8x512xbf16>
    %c0_1 = arith.constant 0 : index
    %c0_2 = arith.constant 0 : index
    %2 = vector.load %arg1[%c0_1, %c0_2] : memref<512x256xbf16, #tpu.memory_space<vmem>>, vector<512x256xbf16>
    %cst = arith.constant dense<0.000000e+00> : vector<8x256xf32>
    %3 = tpu.matmul %1, %2, %cst {dimension_numbers = #tpu.dot_dimension_numbers<[1], [0], [0], [1], [0, 0, 1, 1], [], []>} : vector<8x512xbf16>, vector<512x256xbf16>, vector<8x256xf32> -> vector<8x256xf32>
    %c0_3 = arith.constant 0 : index
    %c0_4 = arith.constant 0 : index
    %4 = vector.load %arg2[%c0_3, %c0_4] : memref<1x256xf32, #tpu.memory_space<vmem>>, vector<1x256xf32>
    %5 = vector.broadcast %4 : vector<1x256xf32> to vector<8x256xf32>
    %6 = arith.addf %3, %5 : vector<8x256xf32>
    %7 = vector.extract_strided_slice %6 {offsets = [0, 0], sizes = [8, 128], strides = [1, 1]} : vector<8x256xf32> to vector<8x128xf32>
    %8 = math.tanh %7 : vector<8x128xf32>
    %9 = vector.extract_strided_slice %6 {offsets = [0, 128], sizes = [8, 128], strides = [1, 1]} : vector<8x256xf32> to vector<8x128xf32>
    %10 = arith.negf %9 : vector<8x128xf32>
    %11 = math.exp %10 : vector<8x128xf32>
    %cst_5 = arith.constant 1.000000e+00 : f32
    %12 = vector.broadcast %cst_5 : f32 to vector<8x128xf32>
    %13 = arith.addf %12, %11 : vector<8x128xf32>
    %14 = arith.divf %12, %13 : vector<8x128xf32>
    %15 = arith.mulf %8, %14 : vector<8x128xf32>
    %c0_6 = arith.constant 0 : index
    %c0_7 = arith.constant 0 : index
    %16 = vector.load %arg3[%c0_6, %c0_7] : memref<1x128xf32, #tpu.memory_space<vmem>>, vector<1x128xf32>
    %17 = vector.broadcast %16 : vector<1x128xf32> to vector<8x128xf32>
    %18 = arith.mulf %15, %17 : vector<8x128xf32>
    %cst_8 = arith.constant dense<0.000000e+00> : vector<8xf32>
    %19 = vector.multi_reduction <add>, %18, %cst_8 [1] : vector<8x128xf32> to vector<8xf32>
    %20 = vector.shape_cast %19 : vector<8xf32> to vector<8x1xf32>
    %c0_9 = arith.constant 0 : index
    %c0_10 = arith.constant 0 : index
    %21 = vector.load %arg4[%c0_9, %c0_10] : memref<1x1xf32, #tpu.memory_space<vmem>>, vector<1x1xf32>
    %22 = vector.broadcast %21 : vector<1x1xf32> to vector<8x1xf32>
    %23 = arith.addf %20, %22 : vector<8x1xf32>
    %cst_11 = arith.constant dense<0xFF800000> : vector<1xf32>
    %24 = vector.multi_reduction <maximumf>, %23, %cst_11 [0] : vector<8x1xf32> to vector<1xf32>
    %25 = vector.shape_cast %24 : vector<1xf32> to vector<1x1xf32>
    %26 = vector.broadcast %25 : vector<1x1xf32> to vector<8x1xf32>
    %27 = arith.subf %23, %26 : vector<8x1xf32>
    %28 = math.exp %27 : vector<8x1xf32>
    %cst_12 = arith.constant dense<0.000000e+00> : vector<1xf32>
    %29 = vector.multi_reduction <add>, %28, %cst_12 [0] : vector<8x1xf32> to vector<1xf32>
    %30 = vector.shape_cast %29 : vector<1xf32> to vector<1x1xf32>
    %31 = vector.broadcast %30 : vector<1x1xf32> to vector<8x1xf32>
    %32 = arith.divf %28, %31 : vector<8x1xf32>
    %c0_13 = arith.constant 0 : index
    %c0_14 = arith.constant 0 : index
    %33 = vector.load %arg5[%c0_13, %c0_14] : memref<8x1xf32, #tpu.memory_space<vmem>>, vector<8x1xf32>
    tpu.vector_store %arg5[%c0_13, %c0_14], %32 {strides = array<i32>} : memref<8x1xf32, #tpu.memory_space<vmem>>, vector<8x1xf32>,
    return
  }
}

</mosaic_0001>

<llo_original>
// kernel: _attention_forward_impl.1
$region0: #{_attention_forward_impl.1}
  #allocation0 [shape = 'u32[]', space=smem, size = 0x4, offset = 0x4, fixed_abs, tag = 'smem constant byte address 0x4 - core index']
  #allocation1 [shape = 'u32[144,128]{1,0:T(1,128)}', space=vmem, size = 0x12000, scoped, tag = 'internal scratch']
  #allocation2 [shape = 'f32[1,1]{1,0:T(1,128)S(1)}', space=vmem, size = 0x200, scoped, tag = 'scoped memory for _attention_forward_impl.1']
  %s0 = inlined_call_operand.hbm [shape: f32[8,512], index: 0, kind: input, shape index: {}]
  %s1 = inlined_call_operand.hbm [shape: bf16[512,256], index: 1, kind: input, shape index: {}]
  %s2 = inlined_call_operand.vmem [shape: f32[1,256], index: 2, kind: input, shape index: {}]
  %s3 = inlined_call_operand.vmem [shape: f32[1,128], index: 3, kind: input, shape index: {}]
  %s4 = inlined_call_operand.<no memory space> [shape: f32[1,1], index: 4, kind: input, shape index: {}]
  %s5 = inlined_call_operand.vmem [shape: f32[8,1], index: 5, kind: output, shape index: {}]
  %s6 = sld [smem:[#allocation0]]
  $region38: #{_attention_forward_impl.1} parent=0
    _
  %s8 = ssub.s32 1, %s6
  %s9 = scalar_select 0, %s8, %s6
  %v10 = vstv %s4
  %11 = vst [vmem:[#allocation2] sm:$0x1] %v10
  $region1: #{_attention_forward_impl.1} parent=0
    #allocation3 [shape = 'u8[16384]{0}', space=vmem, size = 0x4000, scoped, tag = 'input window, operand 0, single buffered']
    #allocation4 [shape = 's32[1]{0}', space=sflag, size = 0x4, scoped, tag = 'scoped memory for _attention_forward_impl.1']
    #allocation5 [shape = 'u8[262144]{0}', space=vmem, size = 0x40000, scoped, tag = 'input window, operand 1, single buffered']
    #allocation6 [shape = 's32[1]{0}', space=sflag, size = 0x4, scoped, tag = 'scoped memory for _attention_forward_impl.1']
    %12 = vsyncpa [#allocation4], 0
    %13 = vsyncpa [#allocation6], 0
    // Predicated region
    $region2: #{_attention_forward_impl.1} parent=1 // pred_check
      _
    $region3: #{_attention_forward_impl.1} parent=1 // pred_check_branch
      %15 = sbr.rel (0) target = $region5
    $region4: #{_attention_forward_impl.1} parent=1 // pred_region
      %s17 = ssub.s32 512, 512
      %18 = vsyncadd [#allocation4], %s17
      %s20 = sshll.u32 [#allocation3], 4
      %s21 = int_to_ptr.vmem [resolvable:$true] %s20
      %23 = dma.hbm_to_vmem [thread:$0]  %s0, 512, %s21, [#allocation4]
    $region5: #{_attention_forward_impl.1} parent=1 // pred_fallthru
      _
    // Predicated region
    $region6: #{_attention_forward_impl.1} parent=1 // pred_check
      _
    $region7: #{_attention_forward_impl.1} parent=1 // pred_check_branch
      %25 = sbr.rel (0) target = $region9
    $region8: #{_attention_forward_impl.1} parent=1 // pred_region
      %s27 = ssub.s32 8192, 8192
      %28 = vsyncadd [#allocation6], %s27
      %s29 = sshll.u32 [#allocation5], 4
      %s30 = int_to_ptr.vmem [resolvable:$true] %s29
      %35 = dma.hbm_to_vmem [thread:$0]  %s1, 8192, %s30, [#allocation6], 128, 128, 8
    $region9: #{_attention_forward_impl.1} parent=1 // pred_fallthru
      _
    // Predicated region
    $region10: #{_attention_forward_impl.1} parent=1 // pred_check
      _
    $region11: #{_attention_forward_impl.1} parent=1 // pred_check_branch
      %37 = sbr.rel (0) target = $region13
    $region12: #{_attention_forward_impl.1} parent=1 // pred_region
      _
    $region13: #{_attention_forward_impl.1} parent=1 // pred_fallthru
      _
    // Predicated region
    $region14: #{_attention_forward_impl.1} parent=1 // pred_check
      _
    $region15: #{_attention_forward_impl.1} parent=1 // pred_check_branch
      %39 = sbr.rel (0) target = $region17
    $region16: #{_attention_forward_impl.1} parent=1 // pred_region
      _
    $region17: #{_attention_forward_impl.1} parent=1 // pred_fallthru
      _
    // Predicated region
    $region18: #{_attention_forward_impl.1} parent=1 // pred_check
      _
    $region19: #{_attention_forward_impl.1} parent=1 // pred_check_branch
      %41 = sbr.rel (0) target = $region21
    $region20: #{_attention_forward_impl.1} parent=1 // pred_region
      _
    $region21: #{_attention_forward_impl.1} parent=1 // pred_fallthru
      _
    // Predicated region
    $region22: #{_attention_forward_impl.1} parent=1 // pred_check
      _
    $region23: #{_attention_forward_impl.1} parent=1 // pred_check_branch
      %43 = sbr.rel (0) target = $region25
    $region24: #{_attention_forward_impl.1} parent=1 // pred_region
      %44 = dma.done [#allocation4], 512
    $region25: #{_attention_forward_impl.1} parent=1 // pred_fallthru
      _
    // Predicated region
    $region26: #{_attention_forward_impl.1} parent=1 // pred_check
      _
    $region27: #{_attention_forward_impl.1} parent=1 // pred_check_branch
      %46 = sbr.rel (0) target = $region29
    $region28: #{_attention_forward_impl.1} parent=1 // pred_region
      %47 = dma.done [#allocation6], 8192
    $region29: #{_attention_forward_impl.1} parent=1 // pred_fallthru
      _
    %v48 = vld [vmem:[#allocation3] sm:$0xff]
    %v49 = vld [vmem:[#allocation3 + $0x8] sm:$0xff]
    %v50 = vld [vmem:[#allocation3 + $0x10] sm:$0xff]
    %v51 = vld [vmem:[#allocation3 + $0x18] sm:$0xff]
    %v52 = vpack.c.bf16 %v48, %v48
    %v53 = vpack.c.bf16 %v49, %v49
    %v54 = vpack.c.bf16 %v50, %v50
    %v55 = vpack.c.bf16 %v51, %v51
    %v56 = vld [vmem:[#allocation5] sm:$0xff]
    %v57 = vld [vmem:[#allocation5 + $0x8] sm:$0xff]
    %v58 = vld [vmem:[#allocation5 + $0x10] sm:$0xff]
    %v59 = vld [vmem:[#allocation5 + $0x18] sm:$0xff]
    %v60 = vld [vmem:[#allocation5 + $0x20] sm:$0xff]
    %v61 = vld [vmem:[#allocation5 + $0x28] sm:$0xff]
    %v62 = vld [vmem:[#allocation5 + $0x30] sm:$0xff]
    %v63 = vld [vmem:[#allocation5 + $0x38] sm:$0xff]
    %v64 = vld [vmem:[#allocation5 + $0x40] sm:$0xff]
    %v65 = vld [vmem:[#allocation5 + $0x48] sm:$0xff]
    %v66 = vld [vmem:[#allocation5 + $0x50] sm:$0xff]
    %v67 = vld [vmem:[#allocation5 + $0x58] sm:$0xff]
    %v68 = vld [vmem:[#allocation5 + $0x60] sm:$0xff]
    %v69 = vld [vmem:[#allocation5 + $0x68] sm:$0xff]
    %v70 = vld [vmem:[#allocation5 + $0x70] sm:$0xff]
    %v71 = vld [vmem:[#allocation5 + $0x78] sm:$0xff]
    %v72 = vld [vmem:[#allocation5 + $0x80] sm:$0xff]
    %v73 = vld [vmem:[#allocation5 + $0x88] sm:$0xff]
    %v74 = vld [vmem:[#allocation5 + $0x90] sm:$0xff]
    %v75 = vld [vmem:[#allocation5 + $0x98] sm:$0xff]
    %v76 = vld [vmem:[#allocation5 + $0xa0] sm:$0xff]
    %v77 = vld [vmem:[#allocation5 + $0xa8] sm:$0xff]
    %v78 = vld [vmem:[#allocation5 + $0xb0] sm:$0xff]
    %v79 = vld [vmem:[#allocation5 + $0xb8] sm:$0xff]
    %v80 = vld [vmem:[#allocation5 + $0xc0] sm:$0xff]
    %v81 = vld [vmem:[#allocation5 + $0xc8] sm:$0xff]
    %v82 = vld [vmem:[#allocation5 + $0xd0] sm:$0xff]
    %v83 = vld [vmem:[#allocation5 + $0xd8] sm:$0xff]
    %v84 = vld [vmem:[#allocation5 + $0xe0] sm:$0xff]
    %v85 = vld [vmem:[#allocation5 + $0xe8] sm:$0xff]
    %v86 = vld [vmem:[#allocation5 + $0xf0] sm:$0xff]
    %v87 = vld [vmem:[#allocation5 + $0xf8] sm:$0xff]
    %v88 = vld [vmem:[#allocation5 + $0x100] sm:$0xff]
    %v89 = vld [vmem:[#allocation5 + $0x108] sm:$0xff]
    %v90 = vld [vmem:[#allocation5 + $0x110] sm:$0xff]
    %v91 = vld [vmem:[#allocation5 + $0x118] sm:$0xff]
    %v92 = vld [vmem:[#allocation5 + $0x120] sm:$0xff]
    %v93 = vld [vmem:[#allocation5 + $0x128] sm:$0xff]
    %v94 = vld [vmem:[#allocation5 + $0x130] sm:$0xff]
    %v95 = vld [vmem:[#allocation5 + $0x138] sm:$0xff]
    %v96 = vld [vmem:[#allocation5 + $0x140] sm:$0xff]
    %v97 = vld [vmem:[#allocation5 + $0x148] sm:$0xff]
    %v98 = vld [vmem:[#allocation5 + $0x150] sm:$0xff]
    %v99 = vld [vmem:[#allocation5 + $0x158] sm:$0xff]
    %v100 = vld [vmem:[#allocation5 + $0x160] sm:$0xff]
    %v101 = vld [vmem:[#allocation5 + $0x168] sm:$0xff]
    %v102 = vld [vmem:[#allocation5 + $0x170] sm:$0xff]
    %v103 = vld [vmem:[#allocation5 + $0x178] sm:$0xff]
    %v104 = vld [vmem:[#allocation5 + $0x180] sm:$0xff]
    %v105 = vld [vmem:[#allocation5 + $0x188] sm:$0xff]
    %v106 = vld [vmem:[#allocation5 + $0x190] sm:$0xff]
    %v107 = vld [vmem:[#allocation5 + $0x198] sm:$0xff]
    %v108 = vld [vmem:[#allocation5 + $0x1a0] sm:$0xff]
    %v109 = vld [vmem:[#allocation5 + $0x1a8] sm:$0xff]
    %v110 = vld [vmem:[#allocation5 + $0x1b0] sm:$0xff]
    %v111 = vld [vmem:[#allocation5 + $0x1b8] sm:$0xff]
    %v112 = vld [vmem:[#allocation5 + $0x1c0] sm:$0xff]
    %v113 = vld [vmem:[#allocation5 + $0x1c8] sm:$0xff]
    %v114 = vld [vmem:[#allocation5 + $0x1d0] sm:$0xff]
    %v115 = vld [vmem:[#allocation5 + $0x1d8] sm:$0xff]
    %v116 = vld [vmem:[#allocation5 + $0x1e0] sm:$0xff]
    %v117 = vld [vmem:[#allocation5 + $0x1e8] sm:$0xff]
    %v118 = vld [vmem:[#allocation5 + $0x1f0] sm:$0xff]
    %v119 = vld [vmem:[#allocation5 + $0x1f8] sm:$0xff]
    %v120 = vld [vmem:[%s2] sm:$0x3]
    %v122 = vlaneseq
    %v123 = vshrl.u32 %v122, 7
    %v124 = vsub.s32 0, %v123
    %v125 = vrot.slane %v120, %v124
    %v126 = vlaneseq
    %v127 = vshrl.u32 %v126, 7
    %v128 = vsub.s32 1, %v127
    %v129 = vrot.slane %v120, %v128
    %v196 = vunpack.c.l.b16 %v56
    %v197 = vunpack.c.h.b16 %v56
    %v198 = vunpack.c.l.b16 %v57
    %v199 = vunpack.c.h.b16 %v57
    %v200 = vunpack.c.l.b16 %v58
    %v201 = vunpack.c.h.b16 %v58
    %v202 = vunpack.c.l.b16 %v59
    %v203 = vunpack.c.h.b16 %v59
    %v204 = vunpack.c.l.b16 %v60
    %v205 = vunpack.c.h.b16 %v60
    %v206 = vunpack.c.l.b16 %v61
    %v207 = vunpack.c.h.b16 %v61
    %v208 = vunpack.c.l.b16 %v62
    %v209 = vunpack.c.h.b16 %v62
    %v210 = vunpack.c.l.b16 %v63
    %v211 = vunpack.c.h.b16 %v63
    %v212 = vunpack.c.l.b16 %v64
    %v213 = vunpack.c.h.b16 %v64
    %v214 = vunpack.c.l.b16 %v65
    %v215 = vunpack.c.h.b16 %v65
    %v216 = vunpack.c.l.b16 %v66
    %v217 = vunpack.c.h.b16 %v66
    %v218 = vunpack.c.l.b16 %v67
    %v219 = vunpack.c.h.b16 %v67
    %v220 = vunpack.c.l.b16 %v68
    %v221 = vunpack.c.h.b16 %v68
    %v222 = vunpack.c.l.b16 %v69
    %v223 = vunpack.c.h.b16 %v69
    %v224 = vunpack.c.l.b16 %v70
    %v225 = vunpack.c.h.b16 %v70
    %v226 = vunpack.c.l.b16 %v71
    %v227 = vunpack.c.h.b16 %v71
    %v228 = vunpack.c.l.b16 %v72
    %v229 = vunpack.c.h.b16 %v72
    %v230 = vunpack.c.l.b16 %v73
    %v231 = vunpack.c.h.b16 %v73
    %v232 = vunpack.c.l.b16 %v74
    %v233 = vunpack.c.h.b16 %v74
    %v234 = vunpack.c.l.b16 %v75
    %v235 = vunpack.c.h.b16 %v75
    %v236 = vunpack.c.l.b16 %v76
    %v237 = vunpack.c.h.b16 %v76
    %v238 = vunpack.c.l.b16 %v77
    %v239 = vunpack.c.h.b16 %v77
    %v240 = vunpack.c.l.b16 %v78
    %v241 = vunpack.c.h.b16 %v78
    %v242 = vunpack.c.l.b16 %v79
    %v243 = vunpack.c.h.b16 %v79
    %v244 = vunpack.c.l.b16 %v80
    %v245 = vunpack.c.h.b16 %v80
    %v246 = vunpack.c.l.b16 %v81
    %v247 = vunpack.c.h.b16 %v81
    %v248 = vunpack.c.l.b16 %v82
    %v249 = vunpack.c.h.b16 %v82
    %v250 = vunpack.c.l.b16 %v83
    %v251 = vunpack.c.h.b16 %v83
    %v252 = vunpack.c.l.b16 %v84
    %v253 = vunpack.c.h.b16 %v84
    %v254 = vunpack.c.l.b16 %v85
    %v255 = vunpack.c.h.b16 %v85
    %v256 = vunpack.c.l.b16 %v86
    %v257 = vunpack.c.h.b16 %v86
    %v258 = vunpack.c.l.b16 %v87
    %v259 = vunpack.c.h.b16 %v87
    %v260 = vunpack.c.l.b16 %v88
    %v261 = vunpack.c.h.b16 %v88
    %v262 = vunpack.c.l.b16 %v89
    %v263 = vunpack.c.h.b16 %v89
    %v264 = vunpack.c.l.b16 %v90
    %v265 = vunpack.c.h.b16 %v90
    %v266 = vunpack.c.l.b16 %v91
    %v267 = vunpack.c.h.b16 %v91
    %v268 = vunpack.c.l.b16 %v92
    %v269 = vunpack.c.h.b16 %v92
    %v270 = vunpack.c.l.b16 %v93
    %v271 = vunpack.c.h.b16 %v93
    %v272 = vunpack.c.l.b16 %v94
    %v273 = vunpack.c.h.b16 %v94
    %v274 = vunpack.c.l.b16 %v95
    %v275 = vunpack.c.h.b16 %v95
    %v276 = vunpack.c.l.b16 %v96
    %v277 = vunpack.c.h.b16 %v96
    %v278 = vunpack.c.l.b16 %v97
    %v279 = vunpack.c.h.b16 %v97
    %v280 = vunpack.c.l.b16 %v98
    %v281 = vunpack.c.h.b16 %v98
    %v282 = vunpack.c.l.b16 %v99
    %v283 = vunpack.c.h.b16 %v99
    %v284 = vunpack.c.l.b16 %v100
    %v285 = vunpack.c.h.b16 %v100
    %v286 = vunpack.c.l.b16 %v101
    %v287 = vunpack.c.h.b16 %v101
    %v288 = vunpack.c.l.b16 %v102
    %v289 = vunpack.c.h.b16 %v102
    %v290 = vunpack.c.l.b16 %v103
    %v291 = vunpack.c.h.b16 %v103
    %v292 = vunpack.c.l.b16 %v104
    %v293 = vunpack.c.h.b16 %v104
    %v294 = vunpack.c.l.b16 %v105
    %v295 = vunpack.c.h.b16 %v105
    %v296 = vunpack.c.l.b16 %v106
    %v297 = vunpack.c.h.b16 %v106
    %v298 = vunpack.c.l.b16 %v107
    %v299 = vunpack.c.h.b16 %v107
    %v300 = vunpack.c.l.b16 %v108
    %v301 = vunpack.c.h.b16 %v108
    %v302 = vunpack.c.l.b16 %v109
    %v303 = vunpack.c.h.b16 %v109
    %v304 = vunpack.c.l.b16 %v110
    %v305 = vunpack.c.h.b16 %v110
    %v306 = vunpack.c.l.b16 %v111
    %v307 = vunpack.c.h.b16 %v111
    %v308 = vunpack.c.l.b16 %v112
    %v309 = vunpack.c.h.b16 %v112
    %v310 = vunpack.c.l.b16 %v113
    %v311 = vunpack.c.h.b16 %v113
    %v312 = vunpack.c.l.b16 %v114
    %v313 = vunpack.c.h.b16 %v114
    %v314 = vunpack.c.l.b16 %v115
    %v315 = vunpack.c.h.b16 %v115
    %v316 = vunpack.c.l.b16 %v116
    %v317 = vunpack.c.h.b16 %v116
    %v318 = vunpack.c.l.b16 %v117
    %v319 = vunpack.c.h.b16 %v117
    %v320 = vunpack.c.l.b16 %v118
    %v321 = vunpack.c.h.b16 %v118
    %v322 = vunpack.c.l.b16 %v119
    %v323 = vunpack.c.h.b16 %v119
    %v324 = vpack.c.b16 %v198, %v196
    %v325 = vpack.c.b16 %v199, %v197
    %v326 = vpack.c.b16 %v202, %v200
    %v327 = vpack.c.b16 %v203, %v201
    %v328 = vpack.c.b16 %v206, %v204
    %v329 = vpack.c.b16 %v207, %v205
    %v330 = vpack.c.b16 %v210, %v208
    %v331 = vpack.c.b16 %v211, %v209
    %v332 = vpack.c.b16 %v214, %v212
    %v333 = vpack.c.b16 %v215, %v213
    %v334 = vpack.c.b16 %v218, %v216
    %v335 = vpack.c.b16 %v219, %v217
    %v336 = vpack.c.b16 %v222, %v220
    %v337 = vpack.c.b16 %v223, %v221
    %v338 = vpack.c.b16 %v226, %v224
    %v339 = vpack.c.b16 %v227, %v225
    %v340 = vpack.c.b16 %v230, %v228
    %v341 = vpack.c.b16 %v231, %v229
    %v342 = vpack.c.b16 %v234, %v232
    %v343 = vpack.c.b16 %v235, %v233
    %v344 = vpack.c.b16 %v238, %v236
    %v345 = vpack.c.b16 %v239, %v237
    %v346 = vpack.c.b16 %v242, %v240
    %v347 = vpack.c.b16 %v243, %v241
    %v348 = vpack.c.b16 %v246, %v244
    %v349 = vpack.c.b16 %v247, %v245
    %v350 = vpack.c.b16 %v250, %v248
    %v351 = vpack.c.b16 %v251, %v249
    %v352 = vpack.c.b16 %v254, %v252
    %v353 = vpack.c.b16 %v255, %v253
    %v354 = vpack.c.b16 %v258, %v256
    %v355 = vpack.c.b16 %v259, %v257
    %v356 = vpack.c.b16 %v262, %v260
    %v357 = vpack.c.b16 %v263, %v261
    %v358 = vpack.c.b16 %v266, %v264
    %v359 = vpack.c.b16 %v267, %v265
    %v360 = vpack.c.b16 %v270, %v268
    %v361 = vpack.c.b16 %v271, %v269
    %v362 = vpack.c.b16 %v274, %v272
    %v363 = vpack.c.b16 %v275, %v273
    %v364 = vpack.c.b16 %v278, %v276
    %v365 = vpack.c.b16 %v279, %v277
    %v366 = vpack.c.b16 %v282, %v280
    %v367 = vpack.c.b16 %v283, %v281
    %v368 = vpack.c.b16 %v286, %v284
    %v369 = vpack.c.b16 %v287, %v285
    %v370 = vpack.c.b16 %v290, %v288
    %v371 = vpack.c.b16 %v291, %v289
    %v372 = vpack.c.b16 %v294, %v292
    %v373 = vpack.c.b16 %v295, %v293
    %v374 = vpack.c.b16 %v298, %v296
    %v375 = vpack.c.b16 %v299, %v297
    %v376 = vpack.c.b16 %v302, %v300
    %v377 = vpack.c.b16 %v303, %v301
    %v378 = vpack.c.b16 %v306, %v304
    %v379 = vpack.c.b16 %v307, %v305
    %v380 = vpack.c.b16 %v310, %v308
    %v381 = vpack.c.b16 %v311, %v309
    %v382 = vpack.c.b16 %v314, %v312
    %v383 = vpack.c.b16 %v315, %v313
    %v384 = vpack.c.b16 %v318, %v316
    %v385 = vpack.c.b16 %v319, %v317
    %v386 = vpack.c.b16 %v322, %v320
    %v387 = vpack.c.b16 %v323, %v321
    %452 = vmatprep.subr.bf16.mxu0 %v325
    %453 = vmatpush1.bf16.msra.mxu0 %v324
    %454 = vmatprep.subr.bf16.mxu0 %v327
    %455 = vmatpush1.bf16.msra.mxu0 %v326
    %456 = vmatprep.subr.bf16.mxu0 %v329
    %457 = vmatpush1.bf16.msra.mxu0 %v328
    %458 = vmatprep.subr.bf16.mxu0 %v331
    %459 = vmatpush1.bf16.msra.mxu0 %v330
    %460 = vmatprep.subr.bf16.mxu0 %v333
    %461 = vmatpush1.bf16.msra.mxu0 %v332
    %462 = vmatprep.subr.bf16.mxu0 %v335
    %463 = vmatpush1.bf16.msra.mxu0 %v334
    %464 = vmatprep.subr.bf16.mxu0 %v337
    %465 = vmatpush1.bf16.msra.mxu0 %v336
    %466 = vmatprep.subr.bf16.mxu0 %v339
    %467 = vmatpush1.bf16.msra.mxu0 %v338
    %468 = vmatprep.subr.bf16.mxu0 %v341
    %469 = vmatpush1.bf16.msra.mxu0 %v340
    %470 = vmatprep.subr.bf16.mxu0 %v343
    %471 = vmatpush1.bf16.msra.mxu0 %v342
    %472 = vmatprep.subr.bf16.mxu0 %v345
    %473 = vmatpush1.bf16.msra.mxu0 %v344
    %474 = vmatprep.subr.bf16.mxu0 %v347
    %475 = vmatpush1.bf16.msra.mxu0 %v346
    %476 = vmatprep.subr.bf16.mxu0 %v349
    %477 = vmatpush1.bf16.msra.mxu0 %v348
    %478 = vmatprep.subr.bf16.mxu0 %v351
    %479 = vmatpush1.bf16.msra.mxu0 %v350
    %480 = vmatprep.subr.bf16.mxu0 %v353
    %481 = vmatpush1.bf16.msra.mxu0 %v352
    %482 = vmatprep.subr.bf16.mxu0 %v355
    %483 = vmatpush1.bf16.msra.mxu0 %v354
    %484 = vmatprep.mubr.bf16.mxu0 %v53
    %485 = vmatmul.mubr.bf16.gmra.mrb[0].mxu0 %v52
    %v486 = vpop.f32.mrb[0].mxu0
    %v487 = vadd.f32 %v125, %v486
    %v488 = vpop.f32.mrb[0].mxu0
    %v489 = vadd.f32 %v129, %v488
    %v490 = vpop.f32.mrb[0].mxu0
    %v491 = vpop.f32.mrb[0].mxu0
    %492 = vdwg.mxu0
    %493 = vmatprep.subr.bf16.mxu0 %v357
    %494 = vmatpush1.bf16.msra.mxu0 %v356
    %495 = vmatprep.subr.bf16.mxu0 %v359
    %496 = vmatpush1.bf16.msra.mxu0 %v358
    %497 = vmatprep.subr.bf16.mxu0 %v361
    %498 = vmatpush1.bf16.msra.mxu0 %v360
    %499 = vmatprep.subr.bf16.mxu0 %v363
    %500 = vmatpush1.bf16.msra.mxu0 %v362
    %501 = vmatprep.subr.bf16.mxu0 %v365
    %502 = vmatpush1.bf16.msra.mxu0 %v364
    %503 = vmatprep.subr.bf16.mxu0 %v367
    %504 = vmatpush1.bf16.msra.mxu0 %v366
    %505 = vmatprep.subr.bf16.mxu0 %v369
    %506 = vmatpush1.bf16.msra.mxu0 %v368
    %507 = vmatprep.subr.bf16.mxu0 %v371
    %508 = vmatpush1.bf16.msra.mxu0 %v370
    %509 = vmatprep.subr.bf16.mxu0 %v373
    %510 = vmatpush1.bf16.msra.mxu0 %v372
    %511 = vmatprep.subr.bf16.mxu0 %v375
    %512 = vmatpush1.bf16.msra.mxu0 %v374
    %513 = vmatprep.subr.bf16.mxu0 %v377
    %514 = vmatpush1.bf16.msra.mxu0 %v376
    %515 = vmatprep.subr.bf16.mxu0 %v379
    %516 = vmatpush1.bf16.msra.mxu0 %v378
    %517 = vmatprep.subr.bf16.mxu0 %v381
    %518 = vmatpush1.bf16.msra.mxu0 %v380
    %519 = vmatprep.subr.bf16.mxu0 %v383
    %520 = vmatpush1.bf16.msra.mxu0 %v382
    %521 = vmatprep.subr.bf16.mxu0 %v385
    %522 = vmatpush1.bf16.msra.mxu0 %v384
    %523 = vmatprep.subr.bf16.mxu0 %v387
    %524 = vmatpush1.bf16.msra.mxu0 %v386
    %525 = vmatprep.mubr.bf16.mxu0 %v55
    %526 = vmatmul.mubr.bf16.gmra.mrb[0].mxu0 %v54
    %v527 = vpop.f32.mrb[0].mxu0
    %v528 = vadd.f32 %v487, %v527
    %v529 = vpop.f32.mrb[0].mxu0
    %v530 = vadd.f32 %v489, %v529
    %v531 = vpop.f32.mrb[0].mxu0
    %v532 = vpop.f32.mrb[0].mxu0
    %533 = vdwg.mxu0
    %v534 = vtanh.pop %v528
    %v535 = vxor.u32 %v530, 2147483648
    %v536 = vmul.f32 %v535, 1.442695
    %v537 = vpow.pop %v536
    %v538 = vadd.f32 %v537, 1.0
    %v539 = vrcp.pop %v538
    %v540 = vmul.f32 1.0, %v539
    %v541 = vmul.f32 %v534, %v540
    %v542 = vld [vmem:[%s3] sm:$0x1]
    %v544 = vlaneseq
    %v545 = vshrl.u32 %v544, 7
    %v546 = vsub.s32 0, %v545
    %v547 = vrot.slane %v542, %v546
    %v549 = vmul.f32 %v541, %v547
    %550 = vadd.xlane.f32.xlu0 %v549
    %v551 = vpop.xlane.xlu0 %550
    %v552 = vld [vmem:[#allocation2] sm:$0x1]
    %v554 = vlaneseq
    %v555 = vshrl.u32 %v554, 7
    %v556 = vsub.s32 0, %v555
    %v557 = vrot.slane %v552, %v556
    %v559 = vadd.f32 %v551, %v557
    %vm560 = vcmask 7168
    %v561 = vsel %vm560, %v559, -inf
    %v562 = vrot.slane %v561, 4
    %v563 = vmax.f32 %v561, %v562
    %v564 = vrot.slane %v563, 2
    %v565 = vmax.f32 %v563, %v564
    %v566 = vrot.slane %v565, 1
    %v567 = vmax.f32 %v565, %v566
    %v568 = vsub.f32 %v559, %v567
    %v569 = vmul.f32 %v568, 1.442695
    %v570 = vpow.pop %v569
    %v571 = vsel %vm560, %v570, 0.0
    %v572 = vrot.slane %v571, 4
    %v573 = vadd.f32 %v571, %v572
    %v574 = vrot.slane %v573, 2
    %v575 = vadd.f32 %v573, %v574
    %v576 = vrot.slane %v575, 1
    %v577 = vadd.f32 %v575, %v576
    %v578 = vrcp.pop %v577
    %v579 = vmul.f32 %v570, %v578
    %580 = vst.msk [vmem:[%s5] sm:$0xff] %vm560, %v579
    // Predicated region
    $region30: #{_attention_forward_impl.1} parent=1 // pred_check
      _
    $region31: #{_attention_forward_impl.1} parent=1 // pred_check_branch
      %582 = sbr.rel (0) target = $region33
    $region32: #{_attention_forward_impl.1} parent=1 // pred_region
      _
    $region33: #{_attention_forward_impl.1} parent=1 // pred_fallthru
      _
    // Predicated region
    $region34: #{_attention_forward_impl.1} parent=1 // pred_check
      _
    $region35: #{_attention_forward_impl.1} parent=1 // pred_check_branch
      %584 = sbr.rel (0) target = $region37
    $region36: #{_attention_forward_impl.1} parent=1 // pred_region
      _
    $region37: #{_attention_forward_impl.1} parent=1 // pred_fallthru
      _
    %585 = vsyncpa [#allocation4], 1
    %586 = vsyncpa [#allocation6], 1

</llo_original>
